<compile_context>
chip_gen: v6e
topology: v6e:2x2x1
jax: 0.10.0
libtpu: 0.0.40
codegen_flags: <defaults>
</compile_context>

<pallas_src>
import math
from functools import partial

import jax
import jax.numpy as jnp
from jax.experimental import pallas as pl
from jax.experimental.pallas import tpu as pltpu


def _round_up(x, m):
    return ((x + m - 1) // m) * m


def _policy_kernel(obs_ref, noise_ref, w_ref, p_ref, action_ref, logp_ref,
                   *, obs_p, c, action_dim):
    # Static row offsets into the packed weight slab (all 16-aligned -> clean
    # sublane-tile-aligned views even for the bf16 (16,128) packing).
    r1 = obs_p
    r2 = r1 + c
    r3 = r2 + c
    r4 = r3 + c

    x = obs_ref[...].astype(jnp.bfloat16)                                    # (TB, obs_p)

    # --- MLP: Linear -> ReLU (x3) -> Linear; bf16 operands, f32 accumulation ---
    h = jnp.dot(x, w_ref[0:r1, :], preferred_element_type=jnp.float32) + p_ref[0:1, :]
    h = jnp.maximum(h, 0.0).astype(jnp.bfloat16)
    h = jnp.dot(h, w_ref[r1:r2, :], preferred_element_type=jnp.float32) + p_ref[1:2, :]
    h = jnp.maximum(h, 0.0).astype(jnp.bfloat16)
    h = jnp.dot(h, w_ref[r2:r3, :], preferred_element_type=jnp.float32) + p_ref[2:3, :]
    h = jnp.maximum(h, 0.0).astype(jnp.bfloat16)
    mu = jnp.dot(h, w_ref[r3:r4, :], preferred_element_type=jnp.float32) + p_ref[3:4, :]
    mu = mu[:, :action_dim]                                                  # (TB, A)

    # --- Normal(mu, std): reparameterized sample + summed log-prob -------------
    noise = noise_ref[...]                                                   # (TB, A) f32
    std = p_ref[4:5, :action_dim]                                            # exp() hoisted to wrapper
    action = mu + std * noise

    # Since action - mu == std * noise exactly:
    #   per-dim log_prob = -0.5*noise^2 - log_std - 0.5*log(2*pi)
    # Noise-independent part (summed over the action dim) is precomputed in p_ref[5, 0].
    logp_ref[...] = (-0.5 * jnp.sum(noise * noise, axis=1, keepdims=True)
                     + p_ref[5:6, 0:1])
    action_ref[...] = action


def policy_forward(obs, params, noise, *, batch_tile=256):
    """PolicyNetwork.forward: returns (action, log_prob) like the PyTorch module."""
    B, obs_dim = obs.shape
    H = params["w1"].shape[1]
    A = params["w4"].shape[1]
    assert noise.shape == (B, A)

    # Padded feature widths (16-aligned so bf16 sublane tiles stay aligned).
    obs_p = _round_up(obs_dim, 16)
    c = _round_up(max(H, A), 16)

    # Batch tile: MXU-friendly 256 when the batch is large, else 8-aligned B.
    tb = batch_tile if B >= batch_tile else _round_up(B, 8)
    b_pad = _round_up(B, tb)

    def pad_to(a, rows, cols):
        a = jnp.asarray(a, jnp.float32)
        if a.ndim == 1:
            a = a.reshape(1, -1)
        return jnp.pad(a, ((0, rows - a.shape[0]), (0, cols - a.shape[1])))

    # ---- pack weights into one bf16 slab (zero padding keeps padded lanes inert) ----
    w_slab = jnp.concatenate(
        [pad_to(params["w1"], obs_p, c),
         pad_to(params["w2"], c, c),
         pad_to(params["w3"], c, c),
         pad_to(params["w4"], c, c)],
        axis=0).astype(jnp.bfloat16)                               # (obs_p + 3c, c)

    # ---- pack biases, std, and the log-prob constant into one f32 slab -------------
    log_std = jnp.asarray(params["log_std"], jnp.float32).reshape(1, A)
    std = jnp.exp(log_std)
    logp_bias = -jnp.sum(log_std) - 0.5 * A * math.log(2.0 * math.pi)  # scalar
    p_slab = jnp.concatenate(
        [pad_to(params["b1"], 1, c),
         pad_to(params["b2"], 1, c),
         pad_to(params["b3"], 1, c),
         pad_to(params["b4"], 1, c),
         pad_to(std, 1, c),
         pad_to(logp_bias.reshape(1, 1), 1, c)],
        axis=0)                                                    # (6, c) f32

    obs_pad = jnp.pad(obs.astype(jnp.float32),
                      ((0, b_pad - B), (0, obs_p - obs_dim)))
    noise_pad = jnp.pad(noise.astype(jnp.float32), ((0, b_pad - B), (0, 0)))

    kernel = partial(_policy_kernel, obs_p=obs_p, c=c, action_dim=A)

    action_pad, logp_pad = pl.pallas_call(
        kernel,
        out_shape=(jax.ShapeDtypeStruct((b_pad, A), jnp.float32),
                   jax.ShapeDtypeStruct((b_pad, 1), jnp.float32)),
        grid=(b_pad // tb,),
        in_specs=[
            pl.BlockSpec((tb, obs_p), lambda i: (i, 0)),           # batch-blocked obs
            pl.BlockSpec((tb, A), lambda i: (i, 0)),               # batch-blocked noise
            pl.BlockSpec(w_slab.shape, lambda i: (0, 0)),          # VMEM-resident weights
            pl.BlockSpec(p_slab.shape, lambda i: (0, 0)),          # VMEM-resident biases/std
        ],
        out_specs=(pl.BlockSpec((tb, A), lambda i: (i, 0)),
                   pl.BlockSpec((tb, 1), lambda i: (i, 0))),
        compiler_params=pltpu.CompilerParams(
            dimension_semantics=("parallel",)),                    # batch shards across TCs (v7x)
    )(obs_pad, noise_pad, w_slab, p_slab)

    return action_pad[:B], logp_pad[:B, 0]


def init_params(key, obs_dim, num_hidden, action_dim):
    """Deterministic synthetic init matching the PyTorch module's shapes."""
    ks = jax.random.split(key, 8)

    def linear(kw, kb, fan_in, fan_out):
        # PyTorch nn.Linear default: U(-1/sqrt(fan_in), 1/sqrt(fan_in))
        bound = 1.0 / math.sqrt(fan_in)
        w = jax.random.uniform(kw, (fan_in, fan_out), jnp.float32, -bound, bound)
        b = jax.random.uniform(kb, (fan_out,), jnp.float32, -bound, bound)
        return w, b

    w1, b1 = linear(ks[0], ks[1], obs_dim, num_hidden)
    w2, b2 = linear(ks[2], ks[3], num_hidden, num_hidden)
    w3, b3 = linear(ks[4], ks[5], num_hidden, num_hidden)
    w4, b4 = linear(ks[6], ks[7], num_hidden, action_dim)
    log_std = jnp.zeros((action_dim,), jnp.float32)   # nn.Parameter(torch.zeros(A))
    return dict(w1=w1, b1=b1, w2=w2, b2=b2, w3=w3, b3=b3, w4=w4, b4=b4,
                log_std=log_std)


if __name__ == "__main__":
    # Small shapes implied by the forward pass: batched obs (B, obs_dim).
    B, OBS_DIM, HIDDEN, ACTION_DIM = 8, 16, 32, 4

    key = jax.random.PRNGKey(0)
    k_params, k_obs, k_noise = jax.random.split(key, 3)

    params = init_params(k_params, OBS_DIM, HIDDEN, ACTION_DIM)
    obs = jax.random.normal(k_obs, (B, OBS_DIM), jnp.float32)
    noise = jax.random.normal(k_noise, (B, ACTION_DIM), jnp.float32)

    action, log_prob = policy_forward(obs, params, noise)
    jax.block_until_ready((action, log_prob))

    # Pure-JAX reference at identical precision (bf16 matmul operands, f32 accum),
    # using the ORIGINAL (un-simplified) Normal.log_prob math as the oracle.
    def lin(x, w, b):
        return jnp.dot(x.astype(jnp.bfloat16), w.astype(jnp.bfloat16),
                       preferred_element_type=jnp.float32) + b.reshape(1, -1)

    h = jnp.maximum(lin(obs, params["w1"], params["b1"]), 0.0)
    h = jnp.maximum(lin(h, params["w2"], params["b2"]), 0.0)
    h = jnp.maximum(lin(h, params["w3"], params["b3"]), 0.0)
    mu = lin(h, params["w4"], params["b4"])
    log_std_ref = params["log_std"].reshape(1, -1)
    std_ref = jnp.exp(log_std_ref)
    act_ref = mu + std_ref * noise
    lp_ref = (-((act_ref - mu) ** 2) / (2.0 * std_ref * std_ref)
              - log_std_ref - 0.5 * math.log(2.0 * math.pi)).sum(axis=1)

    assert action.shape == (B, ACTION_DIM)
    assert log_prob.shape == (B,)
    assert jnp.allclose(action, act_ref, atol=1e-3, rtol=1e-3), \
        float(jnp.max(jnp.abs(action - act_ref)))
    assert jnp.allclose(log_prob, lp_ref, atol=1e-3, rtol=1e-3), \
        float(jnp.max(jnp.abs(log_prob - lp_ref)))

    print("KERNEL_OK")
</pallas_src>

<mosaic_0001>
module attributes {stable_mosaic.version = 11 : i64} {
  func.func @_policy_kernel(%arg0: i32, %arg1: memref<8x16xf32, #tpu.memory_space<vmem>>, %arg2: memref<8x4xf32, #tpu.memory_space<vmem>>, %arg3: memref<112x32xbf16, #tpu.memory_space<vmem>>, %arg4: memref<6x32xf32, #tpu.memory_space<vmem>>, %arg5: memref<8x4xf32, #tpu.memory_space<vmem>>, %arg6: memref<8x1xf32, #tpu.memory_space<vmem>>) attributes {dimension_semantics = [#tpu.dimension_semantics<parallel>], iteration_bounds = array<i64: 1>, scalar_prefetch = 0 : i64, scratch_operands = 0 : i64, tpu.core_type = #tpu.core_type<tc>, window_params = [{transform_indices = @transform_0, window_bounds = array<i64: 8, 16>}, {transform_indices = @transform_1, window_bounds = array<i64: 8, 4>}, {pipeline_mode = #tpu.pipeline_mode<synchronous>, transform_indices = @transform_2, window_bounds = array<i64: 112, 32>}, {pipeline_mode = #tpu.pipeline_mode<synchronous>, transform_indices = @transform_3, window_bounds = array<i64: 6, 32>}, {transform_indices = @transform_4, window_bounds = array<i64: 8, 4>}, {transform_indices = @transform_5, window_bounds = array<i64: 8, 1>}]} {
    %c0 = arith.constant 0 : index
    %c0_0 = arith.constant 0 : index
    %0 = vector.load %arg1[%c0, %c0_0] : memref<8x16xf32, #tpu.memory_space<vmem>>, vector<8x16xf32>
    %1 = arith.truncf %0 : vector<8x16xf32> to vector<8x16xbf16>
    %c0_1 = arith.constant 0 : index
    %c0_2 = arith.constant 0 : index
    %2 = vector.load %arg3[%c0_1, %c0_2] : memref<112x32xbf16, #tpu.memory_space<vmem>>, vector<16x32xbf16>
    %cst = arith.constant dense<0.000000e+00> : vector<8x32xf32>
    %3 = tpu.matmul %1, %2, %cst {dimension_numbers = #tpu.dot_dimension_numbers<[1], [0], [0], [1], [0, 0, 1, 1], [], []>} : vector<8x16xbf16>, vector<16x32xbf16>, vector<8x32xf32> -> vector<8x32xf32>
    %c0_3 = arith.constant 0 : index
    %c0_4 = arith.constant 0 : index
    %4 = vector.load %arg4[%c0_3, %c0_4] : memref<6x32xf32, #tpu.memory_space<vmem>>, vector<1x32xf32>
    %5 = vector.broadcast %4 : vector<1x32xf32> to vector<8x32xf32>
    %6 = arith.addf %3, %5 : vector<8x32xf32>
    %cst_5 = arith.constant 0.000000e+00 : f32
    %7 = vector.broadcast %cst_5 : f32 to vector<8x32xf32>
    %8 = arith.maximumf %6, %7 : vector<8x32xf32>
    %9 = arith.truncf %8 : vector<8x32xf32> to vector<8x32xbf16>
    %c16 = arith.constant 16 : index
    %c0_6 = arith.constant 0 : index
    %10 = vector.load %arg3[%c16, %c0_6] : memref<112x32xbf16, #tpu.memory_space<vmem>>, vector<32x32xbf16>
    %cst_7 = arith.constant dense<0.000000e+00> : vector<8x32xf32>
    %11 = tpu.matmul %9, %10, %cst_7 {dimension_numbers = #tpu.dot_dimension_numbers<[1], [0], [0], [1], [0, 0, 1, 1], [], []>} : vector<8x32xbf16>, vector<32x32xbf16>, vector<8x32xf32> -> vector<8x32xf32>
    %c1 = arith.constant 1 : index
    %c0_8 = arith.constant 0 : index
    %12 = vector.load %arg4[%c1, %c0_8] : memref<6x32xf32, #tpu.memory_space<vmem>>, vector<1x32xf32>
    %13 = vector.broadcast %12 : vector<1x32xf32> to vector<8x32xf32>
    %14 = arith.addf %11, %13 : vector<8x32xf32>
    %cst_9 = arith.constant 0.000000e+00 : f32
    %15 = vector.broadcast %cst_9 : f32 to vector<8x32xf32>
    %16 = arith.maximumf %14, %15 : vector<8x32xf32>
    %17 = arith.truncf %16 : vector<8x32xf32> to vector<8x32xbf16>
    %c48 = arith.constant 48 : index
    %c0_10 = arith.constant 0 : index
    %18 = vector.load %arg3[%c48, %c0_10] : memref<112x32xbf16, #tpu.memory_space<vmem>>, vector<32x32xbf16>
    %cst_11 = arith.constant dense<0.000000e+00> : vector<8x32xf32>
    %19 = tpu.matmul %17, %18, %cst_11 {dimension_numbers = #tpu.dot_dimension_numbers<[1], [0], [0], [1], [0, 0, 1, 1], [], []>} : vector<8x32xbf16>, vector<32x32xbf16>, vector<8x32xf32> -> vector<8x32xf32>
    %c2 = arith.constant 2 : index
    %c0_12 = arith.constant 0 : index
    %20 = vector.load %arg4[%c2, %c0_12] : memref<6x32xf32, #tpu.memory_space<vmem>>, vector<1x32xf32>
    %21 = vector.broadcast %20 : vector<1x32xf32> to vector<8x32xf32>
    %22 = arith.addf %19, %21 : vector<8x32xf32>
    %cst_13 = arith.constant 0.000000e+00 : f32
    %23 = vector.broadcast %cst_13 : f32 to vector<8x32xf32>
    %24 = arith.maximumf %22, %23 : vector<8x32xf32>
    %25 = arith.truncf %24 : vector<8x32xf32> to vector<8x32xbf16>
    %c80 = arith.constant 80 : index
    %c0_14 = arith.constant 0 : index
    %26 = vector.load %arg3[%c80, %c0_14] : memref<112x32xbf16, #tpu.memory_space<vmem>>, vector<32x32xbf16>
    %cst_15 = arith.constant dense<0.000000e+00> : vector<8x32xf32>
    %27 = tpu.matmul %25, %26, %cst_15 {dimension_numbers = #tpu.dot_dimension_numbers<[1], [0], [0], [1], [0, 0, 1, 1], [], []>} : vector<8x32xbf16>, vector<32x32xbf16>, vector<8x32xf32> -> vector<8x32xf32>
    %c3 = arith.constant 3 : index
    %c0_16 = arith.constant 0 : index
    %28 = vector.load %arg4[%c3, %c0_16] : memref<6x32xf32, #tpu.memory_space<vmem>>, vector<1x32xf32>
    %29 = vector.broadcast %28 : vector<1x32xf32> to vector<8x32xf32>
    %30 = arith.addf %27, %29 : vector<8x32xf32>
    %31 = vector.extract_strided_slice %30 {offsets = [0, 0], sizes = [8, 4], strides = [1, 1]} : vector<8x32xf32> to vector<8x4xf32>
    %c0_17 = arith.constant 0 : index
    %c0_18 = arith.constant 0 : index
    %32 = vector.load %arg2[%c0_17, %c0_18] : memref<8x4xf32, #tpu.memory_space<vmem>>, vector<8x4xf32>
    %c4 = arith.constant 4 : index
    %c0_19 = arith.constant 0 : index
    %33 = vector.load %arg4[%c4, %c0_19] : memref<6x32xf32, #tpu.memory_space<vmem>>, vector<1x4xf32>
    %34 = vector.broadcast %33 : vector<1x4xf32> to vector<8x4xf32>
    %35 = arith.mulf %34, %32 : vector<8x4xf32>
    %36 = arith.addf %31, %35 : vector<8x4xf32>
    %37 = arith.mulf %32, %32 : vector<8x4xf32>
    %cst_20 = arith.constant dense<0.000000e+00> : vector<8xf32>
    %38 = vector.multi_reduction <add>, %37, %cst_20 [1] : vector<8x4xf32> to vector<8xf32>
    %39 = vector.shape_cast %38 : vector<8xf32> to vector<8x1xf32>
    %cst_21 = arith.constant -5.000000e-01 : f32
    %40 = vector.broadcast %cst_21 : f32 to vector<8x1xf32>
    %41 = arith.mulf %40, %39 : vector<8x1xf32>
    %c5 = arith.constant 5 : index
    %c0_22 = arith.constant 0 : index
    %42 = vector.load %arg4[%c5, %c0_22] : memref<6x32xf32, #tpu.memory_space<vmem>>, vector<1x1xf32>
    %43 = vector.broadcast %42 : vector<1x1xf32> to vector<8x1xf32>
    %44 = arith.addf %41, %43 : vector<8x1xf32>
    %c0_23 = arith.constant 0 : index
    %c0_24 = arith.constant 0 : index
    %45 = vector.load %arg6[%c0_23, %c0_24] : memref<8x1xf32, #tpu.memory_space<vmem>>, vector<8x1xf32>
    tpu.vector_store %arg6[%c0_23, %c0_24], %44 {strides = array<i32>} : memref<8x1xf32, #tpu.memory_space<vmem>>, vector<8x1xf32>,
    %c0_25 = arith.constant 0 : index
    %c0_26 = arith.constant 0 : index
    %46 = vector.load %arg5[%c0_25, %c0_26] : memref<8x4xf32, #tpu.memory_space<vmem>>, vector<8x4xf32>
    tpu.vector_store %arg5[%c0_25, %c0_26], %36 {strides = array<i32>} : memref<8x4xf32, #tpu.memory_space<vmem>>, vector<8x4xf32>,
    return
  }
  func.func @transform_0(%arg0: i32) -> (i32, i32) {
    %c0_i32 = arith.constant 0 : i32
    %c0_i32_0 = arith.constant 0 : i32
    return %arg0, %c0_i32 : i32, i32
  }
  func.func @transform_1(%arg0: i32) -> (i32, i32) {
    %c0_i32 = arith.constant 0 : i32
    %c0_i32_0 = arith.constant 0 : i32
    return %arg0, %c0_i32 : i32, i32
  }
  func.func @transform_2(%arg0: i32) -> (i32, i32) {
    %c0_i32 = arith.constant 0 : i32
    %c0_i32_0 = arith.constant 0 : i32
    %c0_i32_1 = arith.constant 0 : i32
    return %c0_i32, %c0_i32_0 : i32, i32
  }
  func.func @transform_3(%arg0: i32) -> (i32, i32) {
    %c0_i32 = arith.constant 0 : i32
    %c0_i32_0 = arith.constant 0 : i32
    %c0_i32_1 = arith.constant 0 : i32
    return %c0_i32, %c0_i32_0 : i32, i32
  }
  func.func @transform_4(%arg0: i32) -> (i32, i32) {
    %c0_i32 = arith.constant 0 : i32
    %c0_i32_0 = arith.constant 0 : i32
    return %arg0, %c0_i32 : i32, i32
  }
  func.func @transform_5(%arg0: i32) -> (i32, i32) {
    %c0_i32 = arith.constant 0 : i32
    %c0_i32_0 = arith.constant 0 : i32
    return %arg0, %c0_i32 : i32, i32
  }
}

</mosaic_0001>

<llo_original>
// kernel: tpu_custom_call.1
$region0: #{tpu_custom_call.1}
  #allocation0 [shape = 'u32[]', space=smem, size = 0x4, offset = 0x4, fixed_abs, tag = 'smem constant byte address 0x4 - core index']
  #allocation1 [shape = 'u32[144,128]{1,0:T(1,128)}', space=vmem, size = 0x12000, scoped, tag = 'internal scratch']
  %s0 = inlined_call_operand.vmem [shape: f32[8,16], index: 0, kind: input, shape index: {}]
  %s1 = inlined_call_operand.vmem [shape: f32[8,4], index: 1, kind: input, shape index: {}]
  %s2 = inlined_call_operand.vmem [shape: bf16[112,32], index: 2, kind: input, shape index: {}]
  %s3 = inlined_call_operand.vmem [shape: f32[6,32], index: 3, kind: input, shape index: {}]
  %s4 = inlined_call_operand.vmem [shape: f32[8,4], index: 4, kind: output, shape index: {0}]
  %s5 = inlined_call_operand.vmem [shape: f32[8,1], index: 5, kind: output, shape index: {1}]
  %6 = xla_tuple %s4, %s5
  %s7 = sld [smem:[#allocation0]]
  $region34: #{tpu_custom_call.1} parent=0
    _
  %s9 = ssub.s32 1, %s7
  %s10 = scalar_select 0, %s9, %s7
  // Predicated region
  $region2: #{tpu_custom_call.1} parent=0 // pred_check
    _
  $region3: #{tpu_custom_call.1} parent=0 // pred_check_branch
    %12 = sbr.rel (0) target = $region5
  $region4: #{tpu_custom_call.1} parent=0 // pred_region
    _
  $region5: #{tpu_custom_call.1} parent=0 // pred_fallthru
    _
  // Predicated region
  $region6: #{tpu_custom_call.1} parent=0 // pred_check
    _
  $region7: #{tpu_custom_call.1} parent=0 // pred_check_branch
    %14 = sbr.rel (0) target = $region9
  $region8: #{tpu_custom_call.1} parent=0 // pred_region
    _
  $region9: #{tpu_custom_call.1} parent=0 // pred_fallthru
    _
  // Predicated region
  $region10: #{tpu_custom_call.1} parent=0 // pred_check
    _
  $region11: #{tpu_custom_call.1} parent=0 // pred_check_branch
    %16 = sbr.rel (0) target = $region13
  $region12: #{tpu_custom_call.1} parent=0 // pred_region
    _
  $region13: #{tpu_custom_call.1} parent=0 // pred_fallthru
    _
  // Predicated region
  $region14: #{tpu_custom_call.1} parent=0 // pred_check
    _
  $region15: #{tpu_custom_call.1} parent=0 // pred_check_branch
    %18 = sbr.rel (0) target = $region17
  $region16: #{tpu_custom_call.1} parent=0 // pred_region
    _
  $region17: #{tpu_custom_call.1} parent=0 // pred_fallthru
    _
  %v20 = vld [vmem:[%s0] sm:$0xff]
  %v21 = vpack.c.bf16 %v20, %v20
  %v22 = vld [vmem:[%s2] sm:$0xf]
  %v23 = vld [vmem:[%s2 + $0x4] sm:$0xf]
  %v24 = vld [vmem:[%s3] sm:$0x1]
  %v25 = vlaneseq
  %v26 = vshrl.u32 %v25, 7
  %v27 = vsub.s32 0, %v26
  %v28 = vrot.slane %v24, %v27
  %v31 = vunpack.c.l.b16 %v22
  %v32 = vunpack.c.l.b16 %v23
  %v33 = vpack.c.b16 %v32, %v31
  %vm35 = vcmask 130048
  %v37 = vsel %vm35, %v21, 0
  %39 = vmatprep.subr.bf16.mxu0 0
  %40 = vmatpush1.bf16.msra.mxu0 0
  %41 = vmatprep.subr.bf16.mxu0 0
  %42 = vmatpush1.bf16.msra.mxu0 0
  %43 = vmatprep.subr.bf16.mxu0 0
  %44 = vmatpush1.bf16.msra.mxu0 0
  %45 = vmatprep.subr.bf16.mxu0 0
  %46 = vmatpush1.bf16.msra.mxu0 0
  %47 = vmatprep.subr.bf16.mxu0 0
  %48 = vmatpush1.bf16.msra.mxu0 0
  %49 = vmatprep.subr.bf16.mxu0 0
  %50 = vmatpush1.bf16.msra.mxu0 0
  %51 = vmatprep.subr.bf16.mxu0 0
  %52 = vmatpush1.bf16.msra.mxu0 0
  %53 = vmatprep.subr.bf16.mxu0 0
  %54 = vmatpush1.bf16.msra.mxu0 %v33
  %55 = vmatprep.subr.bf16.mxu0 0
  %56 = vmatpush2.bf16.msra.mxu0 0
  %57 = vmatprep.subr.bf16.mxu0 0
  %58 = vmatpush2.bf16.msra.mxu0 0
  %59 = vmatprep.subr.bf16.mxu0 0
  %60 = vmatpush2.bf16.msra.mxu0 0
  %61 = vmatprep.subr.bf16.mxu0 0
  %62 = vmatpush2.bf16.msra.mxu0 0
  %63 = vmatprep.subr.bf16.mxu0 0
  %64 = vmatpush2.bf16.msra.mxu0 0
  %65 = vmatprep.subr.bf16.mxu0 0
  %66 = vmatpush2.bf16.msra.mxu0 0
  %67 = vmatprep.subr.bf16.mxu0 0
  %68 = vmatpush2.bf16.msra.mxu0 0
  %69 = vmatprep.subr.bf16.mxu0 0
  %70 = vmatpush2.bf16.msra.mxu0 0
  %71 = vmatprep.mubr.bf16.mxu0 0
  %72 = vmatmul.mubr.bf16.gmra.mxu0 %v37
  %v73 = vpop.f32.mrf.mxu0
  %v74 = vadd.f32 %v28, %v73
  %v75 = vpop.f32.mrf.mxu0
  %v76 = vpop.f32.mrf.mxu0
  %v77 = vpop.f32.mrf.mxu0
  %78 = vdwg.mxu0
  %v79 = vmax.f32 %v74, 0.0
  %v80 = vpack.c.bf16 %v79, %v79
  %v81 = vld [vmem:[%s2 + $0x8] sm:$0xf]
  %v82 = vld [vmem:[%s2 + $0xc] sm:$0xf]
  %v83 = vld [vmem:[%s2 + $0x10] sm:$0xf]
  %v84 = vld [vmem:[%s2 + $0x14] sm:$0xf]
  %v85 = vld [vmem:[%s3 + $0x1] sm:$0x1]
  %v86 = vlaneseq
  %v87 = vshrl.u32 %v86, 7
  %v88 = vsub.s32 0, %v87
  %v89 = vrot.slane %v85, %v88
  %v94 = vunpack.c.l.b16 %v81
  %v95 = vunpack.c.l.b16 %v82
  %v96 = vunpack.c.l.b16 %v83
  %v97 = vunpack.c.l.b16 %v84
  %v98 = vpack.c.b16 %v95, %v94
  %v99 = vpack.c.b16 %v97, %v96
  %vm102 = vcmask 261120
  %v104 = vsel %vm102, %v80, 0
  %106 = vmatprep.subr.bf16.mxu0 0
  %107 = vmatpush1.bf16.msra.mxu0 0
  %108 = vmatprep.subr.bf16.mxu0 0
  %109 = vmatpush1.bf16.msra.mxu0 0
  %110 = vmatprep.subr.bf16.mxu0 0
  %111 = vmatpush1.bf16.msra.mxu0 0
  %112 = vmatprep.subr.bf16.mxu0 0
  %113 = vmatpush1.bf16.msra.mxu0 0
  %114 = vmatprep.subr.bf16.mxu0 0
  %115 = vmatpush1.bf16.msra.mxu0 0
  %116 = vmatprep.subr.bf16.mxu0 0
  %117 = vmatpush1.bf16.msra.mxu0 0
  %118 = vmatprep.subr.bf16.mxu0 0
  %119 = vmatpush1.bf16.msra.mxu0 %v99
  %120 = vmatprep.subr.bf16.mxu0 0
  %121 = vmatpush1.bf16.msra.mxu0 %v98
  %122 = vmatprep.subr.bf16.mxu0 0
  %123 = vmatpush2.bf16.msra.mxu0 0
  %124 = vmatprep.subr.bf16.mxu0 0
  %125 = vmatpush2.bf16.msra.mxu0 0
  %126 = vmatprep.subr.bf16.mxu0 0
  %127 = vmatpush2.bf16.msra.mxu0 0
  %128 = vmatprep.subr.bf16.mxu0 0
  %129 = vmatpush2.bf16.msra.mxu0 0
  %130 = vmatprep.subr.bf16.mxu0 0
  %131 = vmatpush2.bf16.msra.mxu0 0
  %132 = vmatprep.subr.bf16.mxu0 0
  %133 = vmatpush2.bf16.msra.mxu0 0
  %134 = vmatprep.subr.bf16.mxu0 0
  %135 = vmatpush2.bf16.msra.mxu0 0
  %136 = vmatprep.subr.bf16.mxu0 0
  %137 = vmatpush2.bf16.msra.mxu0 0
  %138 = vmatprep.mubr.bf16.mxu0 0
  %139 = vmatmul.mubr.bf16.gmra.mxu0 %v104
  %v140 = vpop.f32.mrf.mxu0
  %v141 = vadd.f32 %v89, %v140
  %v142 = vpop.f32.mrf.mxu0
  %v143 = vpop.f32.mrf.mxu0
  %v144 = vpop.f32.mrf.mxu0
  %145 = vdwg.mxu0
  %v146 = vmax.f32 %v141, 0.0
  %v147 = vpack.c.bf16 %v146, %v146
  %v148 = vld [vmem:[%s2 + $0x18] sm:$0xf]
  %v149 = vld [vmem:[%s2 + $0x1c] sm:$0xf]
  %v150 = vld [vmem:[%s2 + $0x20] sm:$0xf]
  %v151 = vld [vmem:[%s2 + $0x24] sm:$0xf]
  %v152 = vld [vmem:[%s3 + $0x2] sm:$0x1]
  %v153 = vlaneseq
  %v154 = vshrl.u32 %v153, 7
  %v155 = vsub.s32 0, %v154
  %v156 = vrot.slane %v152, %v155
  %v161 = vunpack.c.l.b16 %v148
  %v162 = vunpack.c.l.b16 %v149
  %v163 = vunpack.c.l.b16 %v150
  %v164 = vunpack.c.l.b16 %v151
  %v165 = vpack.c.b16 %v162, %v161
  %v166 = vpack.c.b16 %v164, %v163
  %v170 = vsel %vm102, %v147, 0
  %172 = vmatprep.subr.bf16.mxu0 0
  %173 = vmatpush1.bf16.msra.mxu0 0
  %174 = vmatprep.subr.bf16.mxu0 0
  %175 = vmatpush1.bf16.msra.mxu0 0
  %176 = vmatprep.subr.bf16.mxu0 0
  %177 = vmatpush1.bf16.msra.mxu0 0
  %178 = vmatprep.subr.bf16.mxu0 0
  %179 = vmatpush1.bf16.msra.mxu0 0
  %180 = vmatprep.subr.bf16.mxu0 0
  %181 = vmatpush1.bf16.msra.mxu0 0
  %182 = vmatprep.subr.bf16.mxu0 0
  %183 = vmatpush1.bf16.msra.mxu0 0
  %184 = vmatprep.subr.bf16.mxu0 0
  %185 = vmatpush1.bf16.msra.mxu0 %v166
  %186 = vmatprep.subr.bf16.mxu0 0
  %187 = vmatpush1.bf16.msra.mxu0 %v165
  %188 = vmatprep.subr.bf16.mxu0 0
  %189 = vmatpush2.bf16.msra.mxu0 0
  %190 = vmatprep.subr.bf16.mxu0 0
  %191 = vmatpush2.bf16.msra.mxu0 0
  %192 = vmatprep.subr.bf16.mxu0 0
  %193 = vmatpush2.bf16.msra.mxu0 0
  %194 = vmatprep.subr.bf16.mxu0 0
  %195 = vmatpush2.bf16.msra.mxu0 0
  %196 = vmatprep.subr.bf16.mxu0 0
  %197 = vmatpush2.bf16.msra.mxu0 0
  %198 = vmatprep.subr.bf16.mxu0 0
  %199 = vmatpush2.bf16.msra.mxu0 0
  %200 = vmatprep.subr.bf16.mxu0 0
  %201 = vmatpush2.bf16.msra.mxu0 0
  %202 = vmatprep.subr.bf16.mxu0 0
  %203 = vmatpush2.bf16.msra.mxu0 0
  %204 = vmatprep.mubr.bf16.mxu0 0
  %205 = vmatmul.mubr.bf16.gmra.mxu0 %v170
  %v206 = vpop.f32.mrf.mxu0
  %v207 = vadd.f32 %v156, %v206
  %v208 = vpop.f32.mrf.mxu0
  %v209 = vpop.f32.mrf.mxu0
  %v210 = vpop.f32.mrf.mxu0
  %211 = vdwg.mxu0
  %v212 = vmax.f32 %v207, 0.0
  %v213 = vpack.c.bf16 %v212, %v212
  %v214 = vld [vmem:[%s2 + $0x28] sm:$0xf]
  %v215 = vld [vmem:[%s2 + $0x2c] sm:$0xf]
  %v216 = vld [vmem:[%s2 + $0x30] sm:$0xf]
  %v217 = vld [vmem:[%s2 + $0x34] sm:$0xf]
  %v218 = vld [vmem:[%s3 + $0x3] sm:$0x1]
  %v219 = vlaneseq
  %v220 = vshrl.u32 %v219, 7
  %v221 = vsub.s32 0, %v220
  %v222 = vrot.slane %v218, %v221
  %v227 = vunpack.c.l.b16 %v214
  %v228 = vunpack.c.l.b16 %v215
  %v229 = vunpack.c.l.b16 %v216
  %v230 = vunpack.c.l.b16 %v217
  %v231 = vpack.c.b16 %v228, %v227
  %v232 = vpack.c.b16 %v230, %v229
  %v236 = vsel %vm102, %v213, 0
  %238 = vmatprep.subr.bf16.mxu0 0
  %239 = vmatpush1.bf16.msra.mxu0 0
  %240 = vmatprep.subr.bf16.mxu0 0
  %241 = vmatpush1.bf16.msra.mxu0 0
  %242 = vmatprep.subr.bf16.mxu0 0
  %243 = vmatpush1.bf16.msra.mxu0 0
  %244 = vmatprep.subr.bf16.mxu0 0
  %245 = vmatpush1.bf16.msra.mxu0 0
  %246 = vmatprep.subr.bf16.mxu0 0
  %247 = vmatpush1.bf16.msra.mxu0 0
  %248 = vmatprep.subr.bf16.mxu0 0
  %249 = vmatpush1.bf16.msra.mxu0 0
  %250 = vmatprep.subr.bf16.mxu0 0
  %251 = vmatpush1.bf16.msra.mxu0 %v232
  %252 = vmatprep.subr.bf16.mxu0 0
  %253 = vmatpush1.bf16.msra.mxu0 %v231
  %254 = vmatprep.subr.bf16.mxu0 0
  %255 = vmatpush2.bf16.msra.mxu0 0
  %256 = vmatprep.subr.bf16.mxu0 0
  %257 = vmatpush2.bf16.msra.mxu0 0
  %258 = vmatprep.subr.bf16.mxu0 0
  %259 = vmatpush2.bf16.msra.mxu0 0
  %260 = vmatprep.subr.bf16.mxu0 0
  %261 = vmatpush2.bf16.msra.mxu0 0
  %262 = vmatprep.subr.bf16.mxu0 0
  %263 = vmatpush2.bf16.msra.mxu0 0
  %264 = vmatprep.subr.bf16.mxu0 0
  %265 = vmatpush2.bf16.msra.mxu0 0
  %266 = vmatprep.subr.bf16.mxu0 0
  %267 = vmatpush2.bf16.msra.mxu0 0
  %268 = vmatprep.subr.bf16.mxu0 0
  %269 = vmatpush2.bf16.msra.mxu0 0
  %270 = vmatprep.mubr.bf16.mxu0 0
  %271 = vmatmul.mubr.bf16.gmra.mxu0 %v236
  %v272 = vpop.f32.mrf.mxu0
  %v273 = vadd.f32 %v222, %v272
  %v274 = vpop.f32.mrf.mxu0
  %v275 = vpop.f32.mrf.mxu0
  %v276 = vpop.f32.mrf.mxu0
  %277 = vdwg.mxu0
  %v278 = vld [vmem:[%s1] sm:$0xff]
  %v279 = vld [vmem:[%s3 + $0x4] sm:$0x1]
  %v280 = vlaneseq
  %v281 = vshrl.u32 %v280, 7
  %v282 = vsub.s32 0, %v281
  %v283 = vrot.slane %v279, %v282
  %v284 = vmul.f32 %v283, %v278
  %v285 = vadd.f32 %v273, %v284
  %v286 = vmul.f32 %v278, %v278
  %vm287 = vcmask 31744
  %v288 = vsel %vm287, %v286, 0.0
  %289 = vadd.xlane.f32.xlu0 %v288
  %v290 = vpop.xlane.xlu0 %289
  %v291 = vmul.f32 %v290, -0.5
  %v292 = vld [vmem:[%s3 + $0x5] sm:$0x1]
  %v293 = vlaneseq
  %v294 = vshrl.u32 %v293, 7
  %v295 = vsub.s32 0, %v294
  %v296 = vrot.slane %v292, %v295
  %v297 = vadd.f32 %v291, %v296
  %vm298 = vcmask 7168
  %299 = vst.msk [vmem:[%s5] sm:$0xff] %vm298, %v297
  %300 = vst.msk [vmem:[%s4] sm:$0xff] %vm287, %v285
  // Predicated region
  $region18: #{tpu_custom_call.1} parent=0 // pred_check
    _
  $region19: #{tpu_custom_call.1} parent=0 // pred_check_branch
    %302 = sbr.rel (0) target = $region21
  $region20: #{tpu_custom_call.1} parent=0 // pred_region
    _
  $region21: #{tpu_custom_call.1} parent=0 // pred_fallthru
    _
  // Predicated region
  $region22: #{tpu_custom_call.1} parent=0 // pred_check
    _
  $region23: #{tpu_custom_call.1} parent=0 // pred_check_branch
    %304 = sbr.rel (0) target = $region25
  $region24: #{tpu_custom_call.1} parent=0 // pred_region
    _
  $region25: #{tpu_custom_call.1} parent=0 // pred_fallthru
    _
  // Predicated region
  $region26: #{tpu_custom_call.1} parent=0 // pred_check
    _
  $region27: #{tpu_custom_call.1} parent=0 // pred_check_branch
    %306 = sbr.rel (0) target = $region29
  $region28: #{tpu_custom_call.1} parent=0 // pred_region
    _
  $region29: #{tpu_custom_call.1} parent=0 // pred_fallthru
    _
  // Predicated region
  $region30: #{tpu_custom_call.1} parent=0 // pred_check
    _
  $region31: #{tpu_custom_call.1} parent=0 // pred_check_branch
    %308 = sbr.rel (0) target = $region33
  $region32: #{tpu_custom_call.1} parent=0 // pred_region
    _
  $region33: #{tpu_custom_call.1} parent=0 // pred_fallthru
    _

</llo_original>
